<compile_context>
chip_gen: v6e
topology: v6e:2x2x1
jax: 0.10.0
libtpu: 0.0.40
codegen_flags: <defaults>
</compile_context>

<pallas_src>
import itertools
import math

import jax
import jax.numpy as jnp
import numpy as np
from jax.experimental import pallas as pl
from jax.experimental.pallas import tpu as pltpu


def _round_up(x, m):
    return ((x + m - 1) // m) * m


def _poly_combos(n_features, degree):
    """sklearn PolynomialFeatures(include_bias=False) ordering."""
    combos = []
    for d in range(1, degree + 1):
        combos.extend(itertools.combinations_with_replacement(range(n_features), d))
    return combos


def _poly_linear_kernel(x_ref, s_ref, w_ref, o_ref):
    # x_ref: (1, input_size+1)            bf16, last entry is the constant 1.0
    # s_ref: (input_size+1, degree*P_pad) bf16 0/1 selection matrix (all slots)
    # w_ref: (P_pad, O_pad)               bf16 FC weight, pre-transposed/padded,
    #                                     bias folded into the constant-1 column
    # o_ref: (1, O_pad)                   f32 lane-dense output (sliced outside)
    p_pad = w_ref.shape[0]
    degree = s_ref.shape[1] // p_pad

    # ONE MXU pass for all degree slots: g_all[:, t*P_pad + j] = factor t of
    # monomial j (or 1.0 via the homogeneous coordinate, or 0 for padding).
    g_all = jnp.dot(x_ref[...], s_ref[...], preferred_element_type=jnp.float32)

    # Monomial j = prod_t g_all[:, t*P_pad + j]; slabs are 128-lane-aligned
    # static slices -> no vreg relayout. Padded columns stay exactly 0.
    poly = g_all[:, :p_pad]
    for t in range(1, degree):
        poly = poly * g_all[:, t * p_pad:(t + 1) * p_pad]

    # FC layer (bias already folded into the constant-1 feature's weight row).
    o_ref[...] = jnp.dot(poly.astype(jnp.bfloat16), w_ref[...],
                         preferred_element_type=jnp.float32)


def build_model(key, input_size, output_size, degree):
    """Precompute (once) the merged selection matrix and padded FC weight."""
    combos = _poly_combos(input_size, degree)
    n_poly = len(combos)                    # == PolynomialFeatures.n_output_features_
    p_pad = _round_up(n_poly + 1, 128)      # +1 guarantees a spare bias column
    o_pad = _round_up(output_size, 128)
    bias_col = n_poly                       # constant-1 feature column
    n_aug = input_size + 1                  # homogeneous coordinate row

    # Merged selection matrix: S_all[:, t*p_pad : (t+1)*p_pad] is slot t.
    sel = np.zeros((n_aug, degree * p_pad), dtype=np.float32)
    for j, combo in enumerate(combos):
        for t in range(degree):
            if t < len(combo):
                sel[combo[t], t * p_pad + j] = 1.0
            else:
                sel[input_size, t * p_pad + j] = 1.0   # missing factor -> 1.0
    for t in range(degree):
        sel[input_size, t * p_pad + bias_col] = 1.0    # constant-1 feature

    # nn.Linear(n_poly, output_size)-style init, stored pre-transposed + padded,
    # bias folded into the constant-1 column's weight row.
    kw, kb = jax.random.split(key)
    bound = 1.0 / math.sqrt(n_poly)
    w = jax.random.uniform(kw, (n_poly, output_size), jnp.float32, -bound, bound)
    b = jax.random.uniform(kb, (output_size,), jnp.float32, -bound, bound)
    w_pad = jnp.zeros((p_pad, o_pad), jnp.float32)
    w_pad = w_pad.at[:n_poly, :output_size].set(w)
    w_pad = w_pad.at[bias_col, :output_size].set(b)

    params = {"sel": jnp.asarray(sel, jnp.bfloat16),
              "w": w_pad.astype(jnp.bfloat16)}
    ref_params = {"w": w, "b": b}           # f32 copies for the reference check
    meta = dict(input_size=input_size, output_size=output_size, degree=degree,
                n_poly=n_poly, p_pad=p_pad, o_pad=o_pad)
    return params, ref_params, meta


def poly_linear_forward(params, meta, inputs):
    """Matches Linear.forward: reshape to (1, input_size) -> poly feats -> fc."""
    x = jnp.asarray(inputs, jnp.float32).reshape(1, meta["input_size"])
    x_aug = jnp.concatenate([x, jnp.ones((1, 1), jnp.float32)], axis=1)
    x_aug = x_aug.astype(jnp.bfloat16)

    vmem = pl.BlockSpec(memory_space=pltpu.MemorySpace.VMEM)
    out_pad = pl.pallas_call(
        _poly_linear_kernel,
        out_shape=jax.ShapeDtypeStruct((1, meta["o_pad"]), jnp.float32),
        in_specs=[vmem, vmem, vmem],
        out_specs=vmem,
    )(x_aug, params["sel"], params["w"])
    # Padded (1, 128) block gives unmasked lane-dense stores; slice outside.
    return out_pad[:, :meta["output_size"]]


if __name__ == "__main__":
    input_size, output_size, degree = 8, 6, 3
    key = jax.random.PRNGKey(0)
    k_param, k_x = jax.random.split(key)
    params, ref_params, meta = build_model(k_param, input_size, output_size, degree)

    # single sample, as the module's forward reshapes to (1, input_size)
    x = jax.random.uniform(k_x, (input_size,), jnp.float32, minval=-1.0, maxval=1.0)

    fwd = jax.jit(lambda p, xx: poly_linear_forward(p, meta, xx))
    out = jax.block_until_ready(fwd(params, x))

    # pure-JAX f32 reference with the identical PolynomialFeatures ordering
    combos = _poly_combos(input_size, degree)
    feats = jnp.stack([jnp.prod(x[jnp.asarray(c)]) for c in combos]).reshape(1, -1)
    ref = feats @ ref_params["w"] + ref_params["b"].reshape(1, -1)

    assert out.shape == (1, output_size) and out.dtype == jnp.float32
    assert bool(jnp.all(jnp.isfinite(out)))
    # bf16 constants -> ~1% relative error on degree-3 monomials; well inside 5e-2.
    assert bool(jnp.allclose(out, ref, rtol=5e-2, atol=5e-2)), (out, ref)
    print("KERNEL_OK")
</pallas_src>

<mosaic_0001>
module attributes {stable_mosaic.version = 11 : i64} {
  func.func @_poly_linear_kernel(%arg0: memref<1x9xbf16, #tpu.memory_space<vmem>>, %arg1: memref<9x768xbf16, #tpu.memory_space<vmem>>, %arg2: memref<256x128xbf16, #tpu.memory_space<vmem>>, %arg3: memref<1x128xf32, #tpu.memory_space<vmem>>) attributes {dimension_semantics = [], scalar_prefetch = 0 : i64, scratch_operands = 0 : i64, tpu.core_type = #tpu.core_type<tc>} {
    %c0 = arith.constant 0 : index
    %c0_0 = arith.constant 0 : index
    %0 = vector.load %arg0[%c0, %c0_0] : memref<1x9xbf16, #tpu.memory_space<vmem>>, vector<1x9xbf16>
    %c0_1 = arith.constant 0 : index
    %c0_2 = arith.constant 0 : index
    %1 = vector.load %arg1[%c0_1, %c0_2] : memref<9x768xbf16, #tpu.memory_space<vmem>>, vector<9x768xbf16>
    %cst = arith.constant dense<0.000000e+00> : vector<1x768xf32>
    %2 = tpu.matmul %0, %1, %cst {dimension_numbers = #tpu.dot_dimension_numbers<[1], [0], [0], [1], [0, 0, 1, 1], [], []>} : vector<1x9xbf16>, vector<9x768xbf16>, vector<1x768xf32> -> vector<1x768xf32>
    %3 = vector.extract_strided_slice %2 {offsets = [0, 0], sizes = [1, 256], strides = [1, 1]} : vector<1x768xf32> to vector<1x256xf32>
    %4 = vector.extract_strided_slice %2 {offsets = [0, 256], sizes = [1, 256], strides = [1, 1]} : vector<1x768xf32> to vector<1x256xf32>
    %5 = arith.mulf %3, %4 : vector<1x256xf32>
    %6 = vector.extract_strided_slice %2 {offsets = [0, 512], sizes = [1, 256], strides = [1, 1]} : vector<1x768xf32> to vector<1x256xf32>
    %7 = arith.mulf %5, %6 : vector<1x256xf32>
    %8 = arith.truncf %7 : vector<1x256xf32> to vector<1x256xbf16>
    %c0_3 = arith.constant 0 : index
    %c0_4 = arith.constant 0 : index
    %9 = vector.load %arg2[%c0_3, %c0_4] : memref<256x128xbf16, #tpu.memory_space<vmem>>, vector<256x128xbf16>
    %cst_5 = arith.constant dense<0.000000e+00> : vector<1x128xf32>
    %10 = tpu.matmul %8, %9, %cst_5 {dimension_numbers = #tpu.dot_dimension_numbers<[1], [0], [0], [1], [0, 0, 1, 1], [], []>} : vector<1x256xbf16>, vector<256x128xbf16>, vector<1x128xf32> -> vector<1x128xf32>
    %c0_6 = arith.constant 0 : index
    %c0_7 = arith.constant 0 : index
    %11 = vector.load %arg3[%c0_6, %c0_7] : memref<1x128xf32, #tpu.memory_space<vmem>>, vector<1x128xf32>
    tpu.vector_store %arg3[%c0_6, %c0_7], %10 {strides = array<i32>} : memref<1x128xf32, #tpu.memory_space<vmem>>, vector<1x128xf32>,
    return
  }
}

</mosaic_0001>

<llo_original>
// kernel: _lambda_.1
$region0: #{_lambda_.1}
  #allocation0 [shape = 'u32[]', space=smem, size = 0x4, offset = 0x4, fixed_abs, tag = 'smem constant byte address 0x4 - core index']
  #allocation1 [shape = 'u32[144,128]{1,0:T(1,128)}', space=vmem, size = 0x12000, scoped, tag = 'internal scratch']
  %s0 = inlined_call_operand.vmem [shape: bf16[1,9], index: 0, kind: input, shape index: {}]
  %s1 = inlined_call_operand.hbm [shape: bf16[9,768], index: 1, kind: input, shape index: {}]
  %s2 = inlined_call_operand.hbm [shape: bf16[256,128], index: 2, kind: input, shape index: {}]
  %s3 = inlined_call_operand.hbm [shape: f32[1,128], index: 3, kind: output, shape index: {}]
  %s4 = sld [smem:[#allocation0]]
  $region30: #{_lambda_.1} parent=0
    _
  %s6 = ssub.s32 1, %s4
  %s7 = scalar_select 0, %s6, %s4
  $region1: #{_lambda_.1} parent=0
    #allocation2 [shape = 'u8[24576]{0}', space=vmem, size = 0x6000, scoped, tag = 'input window, operand 1, single buffered']
    #allocation3 [shape = 's32[1]{0}', space=sflag, size = 0x4, scoped, tag = 'scoped memory for _lambda_.1']
    #allocation4 [shape = 's32[1]{0}', space=sflag, size = 0x4, scoped, tag = 'scoped memory for _lambda_.1']
    #allocation5 [shape = 'u8[65536]{0}', space=vmem, size = 0x10000, scoped, tag = 'input window, operand 2, single buffered']
    #allocation6 [shape = 's32[1]{0}', space=sflag, size = 0x4, scoped, tag = 'scoped memory for _lambda_.1']
    #allocation7 [shape = 'u8[512]{0}', space=vmem, size = 0x400, scoped, tag = 'output window, operand 0, single buffered']
    %8 = vsyncpa [#allocation3], 0
    %9 = vsyncpa [#allocation6], 0
    %10 = vsyncpa [#allocation4], 0
    // Predicated region
    $region2: #{_lambda_.1} parent=1 // pred_check
      _
    $region3: #{_lambda_.1} parent=1 // pred_check_branch
      %12 = sbr.rel (0) target = $region5
    $region4: #{_lambda_.1} parent=1 // pred_region
      _
    $region5: #{_lambda_.1} parent=1 // pred_fallthru
      _
    // Predicated region
    $region6: #{_lambda_.1} parent=1 // pred_check
      _
    $region7: #{_lambda_.1} parent=1 // pred_check_branch
      %14 = sbr.rel (0) target = $region9
    $region8: #{_lambda_.1} parent=1 // pred_region
      %s16 = ssub.s32 768, 768
      %17 = vsyncadd [#allocation3], %s16
      %s18 = sshll.u32 [#allocation2], 4
      %s19 = int_to_ptr.vmem [resolvable:$true] %s18
      %24 = dma.hbm_to_vmem [thread:$0]  %s1, 768, %s19, [#allocation3], 384, 384, 24
    $region9: #{_lambda_.1} parent=1 // pred_fallthru
      _
    // Predicated region
    $region10: #{_lambda_.1} parent=1 // pred_check
      _
    $region11: #{_lambda_.1} parent=1 // pred_check_branch
      %26 = sbr.rel (0) target = $region13
    $region12: #{_lambda_.1} parent=1 // pred_region
      %s28 = ssub.s32 2048, 2048
      %29 = vsyncadd [#allocation6], %s28
      %s30 = sshll.u32 [#allocation5], 4
      %s31 = int_to_ptr.vmem [resolvable:$true] %s30
      %36 = dma.hbm_to_vmem [thread:$0]  %s2, 2048, %s31, [#allocation6], 64, 64, 4
    $region13: #{_lambda_.1} parent=1 // pred_fallthru
      _
    // Predicated region
    $region14: #{_lambda_.1} parent=1 // pred_check
      _
    $region15: #{_lambda_.1} parent=1 // pred_check_branch
      %38 = sbr.rel (0) target = $region17
    $region16: #{_lambda_.1} parent=1 // pred_region
      %39 = dma.done [#allocation3], 768
    $region17: #{_lambda_.1} parent=1 // pred_fallthru
      _
    // Predicated region
    $region18: #{_lambda_.1} parent=1 // pred_check
      _
    $region19: #{_lambda_.1} parent=1 // pred_check_branch
      %41 = sbr.rel (0) target = $region21
    $region20: #{_lambda_.1} parent=1 // pred_region
      %42 = dma.done [#allocation6], 2048
    $region21: #{_lambda_.1} parent=1 // pred_fallthru
      _
    %v44 = vld [vmem:[%s0] sm:$0x1]
    %v45 = vld [vmem:[#allocation2] sm:$0xff]
    %v46 = vld [vmem:[#allocation2 + $0x8] sm:$0xff]
    %v47 = vld [vmem:[#allocation2 + $0x10] sm:$0xff]
    %v48 = vld [vmem:[#allocation2 + $0x18] sm:$0x11]
    %v49 = vld [vmem:[#allocation2 + $0x20] sm:$0x11]
    %v50 = vld [vmem:[#allocation2 + $0x28] sm:$0x11]
    %v57 = vunpack.c.l.b16 %v45
    %v58 = vunpack.c.h.b16 %v45
    %v59 = vunpack.c.l.b16 %v46
    %v60 = vunpack.c.h.b16 %v46
    %v61 = vunpack.c.l.b16 %v47
    %v62 = vunpack.c.h.b16 %v47
    %v63 = vunpack.c.l.b16 %v48
    %v64 = vunpack.c.h.b16 %v48
    %v65 = vunpack.c.l.b16 %v49
    %v66 = vunpack.c.h.b16 %v49
    %v67 = vunpack.c.l.b16 %v50
    %v68 = vunpack.c.h.b16 %v50
    %v69 = vpack.c.b16 %v63, %v57
    %v70 = vpack.c.b16 %v64, %v58
    %v71 = vpack.c.b16 %v65, %v59
    %v72 = vpack.c.b16 %v66, %v60
    %v73 = vpack.c.b16 %v67, %v61
    %v74 = vpack.c.b16 %v68, %v62
    %vm75 = vcmask 72704
    %v77 = vsel %vm75, %v44, 0
    %vm79 = vcmask 1043456
    %vm80 = vcmask 1044480
    %v81 = vsel %vm79, 4294967295, 65535
    %v82 = vsel %vm80, %v81, 0
    %v84 = vand.u32 %v69, %v82
    %v87 = vand.u32 %v70, %v82
    %v90 = vand.u32 %v71, %v82
    %v93 = vand.u32 %v72, %v82
    %v96 = vand.u32 %v73, %v82
    %v99 = vand.u32 %v74, %v82
    %101 = vmatprep.subr.bf16.mxu0 0
    %102 = vmatpush1.bf16.msra.mxu0 0
    %103 = vmatprep.subr.bf16.mxu0 0
    %104 = vmatpush1.bf16.msra.mxu0 0
    %105 = vmatprep.subr.bf16.mxu0 0
    %106 = vmatpush1.bf16.msra.mxu0 0
    %107 = vmatprep.subr.bf16.mxu0 0
    %108 = vmatpush1.bf16.msra.mxu0 0
    %109 = vmatprep.subr.bf16.mxu0 0
    %110 = vmatpush1.bf16.msra.mxu0 0
    %111 = vmatprep.subr.bf16.mxu0 0
    %112 = vmatpush1.bf16.msra.mxu0 0
    %113 = vmatprep.subr.bf16.mxu0 0
    %114 = vmatpush1.bf16.msra.mxu0 0
    %115 = vmatprep.subr.bf16.mxu0 %v87
    %116 = vmatpush1.bf16.msra.mxu0 %v84
    %117 = vmatprep.subr.bf16.mxu0 0
    %118 = vmatpush2.bf16.msra.mxu0 0
    %119 = vmatprep.subr.bf16.mxu0 0
    %120 = vmatpush2.bf16.msra.mxu0 0
    %121 = vmatprep.subr.bf16.mxu0 0
    %122 = vmatpush2.bf16.msra.mxu0 0
    %123 = vmatprep.subr.bf16.mxu0 0
    %124 = vmatpush2.bf16.msra.mxu0 0
    %125 = vmatprep.subr.bf16.mxu0 0
    %126 = vmatpush2.bf16.msra.mxu0 0
    %127 = vmatprep.subr.bf16.mxu0 0
    %128 = vmatpush2.bf16.msra.mxu0 0
    %129 = vmatprep.subr.bf16.mxu0 0
    %130 = vmatpush2.bf16.msra.mxu0 0
    %131 = vmatprep.subr.bf16.mxu0 0
    %132 = vmatpush2.bf16.msra.mxu0 0
    %133 = vmatprep.mubr.bf16.mxu0 0
    %134 = vmatmul.mubr.bf16.gmra.mxu0 %v77
    %v135 = vpop.f32.mrf.mxu0
    %v136 = vadd.f32 0.0, %v135
    %v137 = vpop.f32.mrf.mxu0
    %v138 = vadd.f32 0.0, %v137
    %v139 = vpop.f32.mrf.mxu0
    %v140 = vpop.f32.mrf.mxu0
    %141 = vdwg.mxu0
    %142 = vmatprep.subr.bf16.mxu0 0
    %143 = vmatpush1.bf16.msra.mxu0 0
    %144 = vmatprep.subr.bf16.mxu0 0
    %145 = vmatpush1.bf16.msra.mxu0 0
    %146 = vmatprep.subr.bf16.mxu0 0
    %147 = vmatpush1.bf16.msra.mxu0 0
    %148 = vmatprep.subr.bf16.mxu0 0
    %149 = vmatpush1.bf16.msra.mxu0 0
    %150 = vmatprep.subr.bf16.mxu0 0
    %151 = vmatpush1.bf16.msra.mxu0 0
    %152 = vmatprep.subr.bf16.mxu0 0
    %153 = vmatpush1.bf16.msra.mxu0 0
    %154 = vmatprep.subr.bf16.mxu0 0
    %155 = vmatpush1.bf16.msra.mxu0 0
    %156 = vmatprep.subr.bf16.mxu0 %v93
    %157 = vmatpush1.bf16.msra.mxu0 %v90
    %158 = vmatprep.subr.bf16.mxu0 0
    %159 = vmatpush2.bf16.msra.mxu0 0
    %160 = vmatprep.subr.bf16.mxu0 0
    %161 = vmatpush2.bf16.msra.mxu0 0
    %162 = vmatprep.subr.bf16.mxu0 0
    %163 = vmatpush2.bf16.msra.mxu0 0
    %164 = vmatprep.subr.bf16.mxu0 0
    %165 = vmatpush2.bf16.msra.mxu0 0
    %166 = vmatprep.subr.bf16.mxu0 0
    %167 = vmatpush2.bf16.msra.mxu0 0
    %168 = vmatprep.subr.bf16.mxu0 0
    %169 = vmatpush2.bf16.msra.mxu0 0
    %170 = vmatprep.subr.bf16.mxu0 0
    %171 = vmatpush2.bf16.msra.mxu0 0
    %172 = vmatprep.subr.bf16.mxu0 0
    %173 = vmatpush2.bf16.msra.mxu0 0
    %174 = vmatprep.mubr.bf16.mxu0 0
    %175 = vmatmul.mubr.bf16.gmra.mxu0 %v77
    %v176 = vpop.f32.mrf.mxu0
    %v177 = vadd.f32 0.0, %v176
    %v178 = vpop.f32.mrf.mxu0
    %v179 = vadd.f32 0.0, %v178
    %v180 = vpop.f32.mrf.mxu0
    %v181 = vpop.f32.mrf.mxu0
    %182 = vdwg.mxu0
    %183 = vmatprep.subr.bf16.mxu0 0
    %184 = vmatpush1.bf16.msra.mxu0 0
    %185 = vmatprep.subr.bf16.mxu0 0
    %186 = vmatpush1.bf16.msra.mxu0 0
    %187 = vmatprep.subr.bf16.mxu0 0
    %188 = vmatpush1.bf16.msra.mxu0 0
    %189 = vmatprep.subr.bf16.mxu0 0
    %190 = vmatpush1.bf16.msra.mxu0 0
    %191 = vmatprep.subr.bf16.mxu0 0
    %192 = vmatpush1.bf16.msra.mxu0 0
    %193 = vmatprep.subr.bf16.mxu0 0
    %194 = vmatpush1.bf16.msra.mxu0 0
    %195 = vmatprep.subr.bf16.mxu0 0
    %196 = vmatpush1.bf16.msra.mxu0 0
    %197 = vmatprep.subr.bf16.mxu0 %v99
    %198 = vmatpush1.bf16.msra.mxu0 %v96
    %199 = vmatprep.subr.bf16.mxu0 0
    %200 = vmatpush2.bf16.msra.mxu0 0
    %201 = vmatprep.subr.bf16.mxu0 0
    %202 = vmatpush2.bf16.msra.mxu0 0
    %203 = vmatprep.subr.bf16.mxu0 0
    %204 = vmatpush2.bf16.msra.mxu0 0
    %205 = vmatprep.subr.bf16.mxu0 0
    %206 = vmatpush2.bf16.msra.mxu0 0
    %207 = vmatprep.subr.bf16.mxu0 0
    %208 = vmatpush2.bf16.msra.mxu0 0
    %209 = vmatprep.subr.bf16.mxu0 0
    %210 = vmatpush2.bf16.msra.mxu0 0
    %211 = vmatprep.subr.bf16.mxu0 0
    %212 = vmatpush2.bf16.msra.mxu0 0
    %213 = vmatprep.subr.bf16.mxu0 0
    %214 = vmatpush2.bf16.msra.mxu0 0
    %215 = vmatprep.mubr.bf16.mxu0 0
    %216 = vmatmul.mubr.bf16.gmra.mxu0 %v77
    %v217 = vpop.f32.mrf.mxu0
    %v218 = vadd.f32 0.0, %v217
    %v219 = vpop.f32.mrf.mxu0
    %v220 = vadd.f32 0.0, %v219
    %v221 = vpop.f32.mrf.mxu0
    %v222 = vpop.f32.mrf.mxu0
    %223 = vdwg.mxu0
    %v224 = vmul.f32 %v136, %v177
    %v225 = vmul.f32 %v138, %v179
    %v226 = vmul.f32 %v224, %v218
    %v227 = vmul.f32 %v225, %v220
    %v228 = vpack.c.bf16 %v226, %v226
    %v229 = vpack.c.bf16 %v227, %v227
    %v230 = vld [vmem:[#allocation5] sm:$0xf]
    %v231 = vld [vmem:[#allocation5 + $0x4] sm:$0xf]
    %v232 = vld [vmem:[#allocation5 + $0x8] sm:$0xf]
    %v233 = vld [vmem:[#allocation5 + $0xc] sm:$0xf]
    %v234 = vld [vmem:[#allocation5 + $0x10] sm:$0xf]
    %v235 = vld [vmem:[#allocation5 + $0x14] sm:$0xf]
    %v236 = vld [vmem:[#allocation5 + $0x18] sm:$0xf]
    %v237 = vld [vmem:[#allocation5 + $0x1c] sm:$0xf]
    %v238 = vld [vmem:[#allocation5 + $0x20] sm:$0xf]
    %v239 = vld [vmem:[#allocation5 + $0x24] sm:$0xf]
    %v240 = vld [vmem:[#allocation5 + $0x28] sm:$0xf]
    %v241 = vld [vmem:[#allocation5 + $0x2c] sm:$0xf]
    %v242 = vld [vmem:[#allocation5 + $0x30] sm:$0xf]
    %v243 = vld [vmem:[#allocation5 + $0x34] sm:$0xf]
    %v244 = vld [vmem:[#allocation5 + $0x38] sm:$0xf]
    %v245 = vld [vmem:[#allocation5 + $0x3c] sm:$0xf]
    %v246 = vld [vmem:[#allocation5 + $0x40] sm:$0xf]
    %v247 = vld [vmem:[#allocation5 + $0x44] sm:$0xf]
    %v248 = vld [vmem:[#allocation5 + $0x48] sm:$0xf]
    %v249 = vld [vmem:[#allocation5 + $0x4c] sm:$0xf]
    %v250 = vld [vmem:[#allocation5 + $0x50] sm:$0xf]
    %v251 = vld [vmem:[#allocation5 + $0x54] sm:$0xf]
    %v252 = vld [vmem:[#allocation5 + $0x58] sm:$0xf]
    %v253 = vld [vmem:[#allocation5 + $0x5c] sm:$0xf]
    %v254 = vld [vmem:[#allocation5 + $0x60] sm:$0xf]
    %v255 = vld [vmem:[#allocation5 + $0x64] sm:$0xf]
    %v256 = vld [vmem:[#allocation5 + $0x68] sm:$0xf]
    %v257 = vld [vmem:[#allocation5 + $0x6c] sm:$0xf]
    %v258 = vld [vmem:[#allocation5 + $0x70] sm:$0xf]
    %v259 = vld [vmem:[#allocation5 + $0x74] sm:$0xf]
    %v260 = vld [vmem:[#allocation5 + $0x78] sm:$0xf]
    %v261 = vld [vmem:[#allocation5 + $0x7c] sm:$0xf]
    %v294 = vunpack.c.l.b16 %v230
    %v295 = vunpack.c.l.b16 %v231
    %v296 = vunpack.c.l.b16 %v232
    %v297 = vunpack.c.l.b16 %v233
    %v298 = vunpack.c.l.b16 %v234
    %v299 = vunpack.c.l.b16 %v235
    %v300 = vunpack.c.l.b16 %v236
    %v301 = vunpack.c.l.b16 %v237
    %v302 = vunpack.c.l.b16 %v238
    %v303 = vunpack.c.l.b16 %v239
    %v304 = vunpack.c.l.b16 %v240
    %v305 = vunpack.c.l.b16 %v241
    %v306 = vunpack.c.l.b16 %v242
    %v307 = vunpack.c.l.b16 %v243
    %v308 = vunpack.c.l.b16 %v244
    %v309 = vunpack.c.l.b16 %v245
    %v310 = vunpack.c.l.b16 %v246
    %v311 = vunpack.c.l.b16 %v247
    %v312 = vunpack.c.l.b16 %v248
    %v313 = vunpack.c.l.b16 %v249
    %v314 = vunpack.c.l.b16 %v250
    %v315 = vunpack.c.l.b16 %v251
    %v316 = vunpack.c.l.b16 %v252
    %v317 = vunpack.c.l.b16 %v253
    %v318 = vunpack.c.l.b16 %v254
    %v319 = vunpack.c.l.b16 %v255
    %v320 = vunpack.c.l.b16 %v256
    %v321 = vunpack.c.l.b16 %v257
    %v322 = vunpack.c.l.b16 %v258
    %v323 = vunpack.c.l.b16 %v259
    %v324 = vunpack.c.l.b16 %v260
    %v325 = vunpack.c.l.b16 %v261
    %v326 = vpack.c.b16 %v295, %v294
    %v327 = vpack.c.b16 %v297, %v296
    %v328 = vpack.c.b16 %v299, %v298
    %v329 = vpack.c.b16 %v301, %v300
    %v330 = vpack.c.b16 %v303, %v302
    %v331 = vpack.c.b16 %v305, %v304
    %v332 = vpack.c.b16 %v307, %v306
    %v333 = vpack.c.b16 %v309, %v308
    %v334 = vpack.c.b16 %v311, %v310
    %v335 = vpack.c.b16 %v313, %v312
    %v336 = vpack.c.b16 %v315, %v314
    %v337 = vpack.c.b16 %v317, %v316
    %v338 = vpack.c.b16 %v319, %v318
    %v339 = vpack.c.b16 %v321, %v320
    %v340 = vpack.c.b16 %v323, %v322
    %v341 = vpack.c.b16 %v325, %v324
    %358 = vmatprep.subr.bf16.mxu0 0
    %359 = vmatpush1.bf16.msra.mxu0 %v333
    %360 = vmatprep.subr.bf16.mxu0 0
    %361 = vmatpush1.bf16.msra.mxu0 %v332
    %362 = vmatprep.subr.bf16.mxu0 0
    %363 = vmatpush1.bf16.msra.mxu0 %v331
    %364 = vmatprep.subr.bf16.mxu0 0
    %365 = vmatpush1.bf16.msra.mxu0 %v330
    %366 = vmatprep.subr.bf16.mxu0 0
    %367 = vmatpush1.bf16.msra.mxu0 %v329
    %368 = vmatprep.subr.bf16.mxu0 0
    %369 = vmatpush1.bf16.msra.mxu0 %v328
    %370 = vmatprep.subr.bf16.mxu0 0
    %371 = vmatpush1.bf16.msra.mxu0 %v327
    %372 = vmatprep.subr.bf16.mxu0 0
    %373 = vmatpush1.bf16.msra.mxu0 %v326
    %374 = vmatprep.subr.bf16.mxu0 0
    %375 = vmatpush2.bf16.msra.mxu0 %v341
    %376 = vmatprep.subr.bf16.mxu0 0
    %377 = vmatpush2.bf16.msra.mxu0 %v340
    %378 = vmatprep.subr.bf16.mxu0 0
    %379 = vmatpush2.bf16.msra.mxu0 %v339
    %380 = vmatprep.subr.bf16.mxu0 0
    %381 = vmatpush2.bf16.msra.mxu0 %v338
    %382 = vmatprep.subr.bf16.mxu0 0
    %383 = vmatpush2.bf16.msra.mxu0 %v337
    %384 = vmatprep.subr.bf16.mxu0 0
    %385 = vmatpush2.bf16.msra.mxu0 %v336
    %386 = vmatprep.subr.bf16.mxu0 0
    %387 = vmatpush2.bf16.msra.mxu0 %v335
    %388 = vmatprep.subr.bf16.mxu0 0
    %389 = vmatpush2.bf16.msra.mxu0 %v334
    %390 = vmatprep.mubr.bf16.mxu0 %v229
    %391 = vmatmul.mubr.bf16.gmra.mxu0 %v228
    %v392 = vpop.f32.mrf.mxu0
    %v393 = vadd.f32 0.0, %v392
    %v394 = vpop.f32.mrf.mxu0
    %v395 = vpop.f32.mrf.mxu0
    %v396 = vpop.f32.mrf.mxu0
    %397 = vdwg.mxu0
    %398 = vst [vmem:[#allocation7] sm:$0x1] %v393
    // Predicated region
    $region22: #{_lambda_.1} parent=1 // pred_check
      _
    $region23: #{_lambda_.1} parent=1 // pred_check_branch
      %400 = sbr.rel (0) target = $region25
    $region24: #{_lambda_.1} parent=1 // pred_region
      %s402 = ssub.s32 16, 16
      %403 = vsyncadd [#allocation4], %s402
      %s405 = sshll.u32 [#allocation7], 4
      %s406 = int_to_ptr.vmem [resolvable:$true] %s405
      %408 = dma.vmem_to_hbm [thread:$0]  %s406, 16, %s3, [#allocation4]
    $region25: #{_lambda_.1} parent=1 // pred_fallthru
      _
    // Predicated region
    $region26: #{_lambda_.1} parent=1 // pred_check
      _
    $region27: #{_lambda_.1} parent=1 // pred_check_branch
      %410 = sbr.rel (0) target = $region29
    $region28: #{_lambda_.1} parent=1 // pred_region
      %411 = dma.done [#allocation4], 16
    $region29: #{_lambda_.1} parent=1 // pred_fallthru
      _
    %412 = vsyncpa [#allocation3], 1
    %413 = vsyncpa [#allocation6], 1
    %414 = vsyncpa [#allocation4], 1

</llo_original>
